<compile_context>
chip_gen: v7x
topology: tpu7x:2x2x1
jax: 0.10.0
libtpu: 0.0.40
codegen_flags: <defaults>
</compile_context>

<pallas_src>
import functools
import math

import jax
import jax.numpy as jnp
from jax.experimental import pallas as pl
from jax.experimental.pallas import tpu as pltpu


def _squash_kernel(x_ref, o_ref, *, eps):
    # Block layout: (tr, D) — rows on sublanes, reduction dim D on lanes.
    x = x_ref[...]                                          # (tr, D) input dtype
    xf = x.astype(jnp.float32)
    ssq = jnp.sum(xf * xf, axis=-1, keepdims=True)          # (tr, 1) f32 accum
    norm = jnp.sqrt(ssq)                                    # (tr, 1)
    # coef = 1 - 1/(exp(norm)+eps) == 1 - exp(-norm) up to O(eps) (exp(norm)>=1),
    # and overflow-safe.  Fold coef with 1/(norm+eps) into one per-row scale so
    # the only full-tile VPU op is a single broadcast multiply (exp -> EUP).
    inv = pl.reciprocal(norm + eps, approx=False)           # exact; row-only cost
    scale = (1.0 - jnp.exp(-norm)) * inv                    # (tr, 1) f32
    if x.dtype == jnp.float32:
        out = xf * scale
    else:
        # Keep the full-tile multiply in the input dtype (halves VPU/vreg work
        # for bf16); the norm/scale math above stayed in f32.
        out = x * scale.astype(x.dtype)
    o_ref[...] = out.astype(o_ref.dtype)


def squash(x, eps=1e-20, target_block_bytes=4 << 20,
           vmem_limit_bytes=48 * 1024 * 1024):
    """Pallas Squash. x: (..., D). Returns same shape/dtype as x."""
    orig_shape = x.shape
    D = orig_shape[-1]
    R = math.prod(orig_shape[:-1]) if len(orig_shape) > 1 else 1

    # Free contiguous reshape to (R, D); no physical transpose anywhere.
    x2 = x.reshape(R, D)

    # Row tile: ~target_block_bytes per block, multiple of 8 sublanes (or the
    # full R).  D stays the full last dim (legal even when D < 128 / % 128 != 0).
    itemsize = jnp.dtype(x.dtype).itemsize
    bytes_per_row = D * itemsize
    tr = max(8, (max(1, target_block_bytes // bytes_per_row) // 8) * 8)
    if tr >= R:
        tr = R                                              # full dim always legal
    grid = (pl.cdiv(R, tr),)                                # padded tail if needed

    kernel = functools.partial(_squash_kernel, eps=float(eps))

    out2 = pl.pallas_call(
        kernel,
        out_shape=jax.ShapeDtypeStruct((R, D), x.dtype),
        grid=grid,
        in_specs=[pl.BlockSpec((tr, D), lambda i: (i, 0))],
        out_specs=pl.BlockSpec((tr, D), lambda i: (i, 0)),
        compiler_params=pltpu.CompilerParams(
            dimension_semantics=("parallel",),              # megacore sharding on v7x
            vmem_limit_bytes=vmem_limit_bytes,
        ),
    )(x2)

    return out2.reshape(orig_shape)


def squash_ref(x, eps=1e-20):
    """Pure-JAX reference matching the PyTorch module."""
    xf = x.astype(jnp.float32)
    norm = jnp.linalg.norm(xf, ord=2, axis=-1, keepdims=True)
    coef = 1.0 - 1.0 / (jnp.exp(norm) + eps)
    unit = xf / (norm + eps)
    return (coef * unit).astype(x.dtype)


if __name__ == "__main__":
    key = jax.random.PRNGKey(0)
    k1, k2, k3 = jax.random.split(key, 3)

    # Capsule-style input: batch=2, num_capsules=16, capsule_dim=32 (single block).
    x = jax.random.normal(k1, (2, 16, 32), dtype=jnp.float32)
    out = jax.block_until_ready(squash(x))
    ref = squash_ref(x)
    assert out.shape == x.shape and out.dtype == x.dtype
    assert jnp.allclose(out, ref, atol=1e-5, rtol=1e-5), "mismatch vs reference (test 1)"

    # Multi-step grid with a padded tail block: R = 300 rows, D = 24,
    # forced 64-row tiles -> grid of 5 with a 44-row tail.
    x2 = jax.random.normal(k2, (2, 150, 24), dtype=jnp.float32)
    out2 = jax.block_until_ready(squash(x2, target_block_bytes=64 * 24 * 4))
    ref2 = squash_ref(x2)
    assert out2.shape == x2.shape and out2.dtype == x2.dtype
    assert jnp.allclose(out2, ref2, atol=1e-5, rtol=1e-5), "mismatch vs reference (test 2)"

    # bf16 input: exercises dtype-sized blocks and the input-dtype tile multiply.
    x3 = jax.random.normal(k3, (4, 8, 32), dtype=jnp.bfloat16)
    out3 = jax.block_until_ready(squash(x3))
    ref3 = squash_ref(x3)
    assert out3.shape == x3.shape and out3.dtype == x3.dtype
    assert jnp.allclose(out3.astype(jnp.float32), ref3.astype(jnp.float32),
                        atol=3e-2, rtol=3e-2), "mismatch vs reference (test 3)"

    print("KERNEL_OK")
</pallas_src>

<mosaic_0001>
module attributes {stable_mosaic.version = 11 : i64} {
  func.func @_squash_kernel(%arg0: i32, %arg1: memref<32x32xf32, #tpu.memory_space<vmem>>, %arg2: memref<32x32xf32, #tpu.memory_space<vmem>>) attributes {dimension_semantics = [#tpu.dimension_semantics<parallel>], iteration_bounds = array<i64: 1>, scalar_prefetch = 0 : i64, scratch_operands = 0 : i64, tpu.core_type = #tpu.core_type<tc>, window_params = [{transform_indices = @transform_0, window_bounds = array<i64: 32, 32>}, {transform_indices = @transform_1, window_bounds = array<i64: 32, 32>}]} {
    %c0 = arith.constant 0 : index
    %c0_0 = arith.constant 0 : index
    %0 = vector.load %arg1[%c0, %c0_0] : memref<32x32xf32, #tpu.memory_space<vmem>>, vector<32x32xf32>
    %1 = arith.mulf %0, %0 : vector<32x32xf32>
    %cst = arith.constant dense<0.000000e+00> : vector<32xf32>
    %2 = vector.multi_reduction <add>, %1, %cst [1] : vector<32x32xf32> to vector<32xf32>
    %3 = vector.shape_cast %2 : vector<32xf32> to vector<32x1xf32>
    %4 = math.sqrt %3 : vector<32x1xf32>
    %cst_1 = arith.constant 9.99999968E-21 : f32
    %5 = vector.broadcast %cst_1 : f32 to vector<32x1xf32>
    %6 = arith.addf %4, %5 : vector<32x1xf32>
    %7 = tpu.reciprocal %6 : vector<32x1xf32> -> vector<32x1xf32>
    %cst_2 = arith.constant 0.000000e+00 : f32
    %8 = vector.broadcast %cst_2 : f32 to vector<32x1xf32>
    %9 = arith.subf %8, %4 : vector<32x1xf32>
    %10 = math.exp %9 : vector<32x1xf32>
    %cst_3 = arith.constant 1.000000e+00 : f32
    %11 = vector.broadcast %cst_3 : f32 to vector<32x1xf32>
    %12 = arith.subf %11, %10 : vector<32x1xf32>
    %13 = arith.mulf %12, %7 : vector<32x1xf32>
    %14 = vector.broadcast %13 : vector<32x1xf32> to vector<32x32xf32>
    %15 = arith.mulf %0, %14 : vector<32x32xf32>
    %c0_4 = arith.constant 0 : index
    %c0_5 = arith.constant 0 : index
    %16 = vector.load %arg2[%c0_4, %c0_5] : memref<32x32xf32, #tpu.memory_space<vmem>>, vector<32x32xf32>
    tpu.vector_store %arg2[%c0_4, %c0_5], %15 {strides = array<i32>} : memref<32x32xf32, #tpu.memory_space<vmem>>, vector<32x32xf32>,
    return
  }
  func.func @transform_0(%arg0: i32) -> (i32, i32) {
    %c0_i32 = arith.constant 0 : i32
    %c0_i32_0 = arith.constant 0 : i32
    return %arg0, %c0_i32 : i32, i32
  }
  func.func @transform_1(%arg0: i32) -> (i32, i32) {
    %c0_i32 = arith.constant 0 : i32
    %c0_i32_0 = arith.constant 0 : i32
    return %arg0, %c0_i32 : i32, i32
  }
}

</mosaic_0001>

<llo_original>
// kernel: tpu_custom_call.1
$region0: #{tpu_custom_call.1}
  #allocation0 [shape = 'u32[]', space=smem, size = 0x4, offset = 0x4, fixed_abs, tag = 'smem constant byte address 0x4 - core index']
  #allocation1 [shape = 'u32[144,128]{1,0:T(1,128)}', space=vmem, size = 0x12000, scoped, tag = 'internal scratch']
  %s0 = inlined_call_operand.hbm [shape: f32[32,32], index: 0, kind: input, shape index: {}]
  %s1 = inlined_call_operand.hbm [shape: f32[32,32], index: 1, kind: output, shape index: {}]
  %s2 = sld [smem:[#allocation0]]
  $region18: #{tpu_custom_call.1} parent=0
    _
  %s4 = ssub.s32 1, %s2
  %s5 = scalar_select 0, %s4, %s2
  $region1: #{tpu_custom_call.1} parent=0
    #allocation2 [shape = 'u8[16384]{0}', space=vmem, size = 0x4000, scoped, tag = 'input window, operand 0, single buffered']
    #allocation3 [shape = 's32[1]{0}', space=sflag, size = 0x4, scoped, tag = 'scoped memory for tpu_custom_call.1']
    #allocation4 [shape = 's32[1]{0}', space=sflag, size = 0x4, scoped, tag = 'scoped memory for tpu_custom_call.1']
    #allocation5 [shape = 'u8[16384]{0}', space=vmem, size = 0x4000, scoped, tag = 'output window, operand 0, single buffered']
    %6 = vsyncpa [#allocation3], 0
    %7 = vsyncpa [#allocation4], 0
    // Predicated region
    $region2: #{tpu_custom_call.1} parent=1 // pred_check
      _
    $region3: #{tpu_custom_call.1} parent=1 // pred_check_branch
      %9 = sbr.rel (0) target = $region5
    $region4: #{tpu_custom_call.1} parent=1 // pred_region
      %s11 = ssub.s32 512, 512
      %12 = vsyncadd [#allocation3], %s11
      %s13 = sshll.u32 [#allocation2], 4
      %s14 = int_to_ptr.vmem [resolvable:$true] %s13
      %19 = dma.hbm_to_vmem [thread:$0]  %s0, 512, %s14, [#allocation3], 128, 128, 8
    $region5: #{tpu_custom_call.1} parent=1 // pred_fallthru
      _
    // Predicated region
    $region6: #{tpu_custom_call.1} parent=1 // pred_check
      _
    $region7: #{tpu_custom_call.1} parent=1 // pred_check_branch
      %21 = sbr.rel (0) target = $region9
    $region8: #{tpu_custom_call.1} parent=1 // pred_region
      %22 = dma.done [#allocation3], 512
    $region9: #{tpu_custom_call.1} parent=1 // pred_fallthru
      _
    %v23 = vld [vmem:[#allocation2] sm:$0xff]
    %v24 = vld [vmem:[#allocation2 + $0x8] sm:$0xff]
    %v25 = vld [vmem:[#allocation2 + $0x10] sm:$0xff]
    %v26 = vld [vmem:[#allocation2 + $0x18] sm:$0xff]
    %v27 = vmul.f32 %v23, %v23
    %v28 = vmul.f32 %v24, %v24
    %v29 = vmul.f32 %v25, %v25
    %v30 = vmul.f32 %v26, %v26
    %vm31 = vcmask 261120
    %v32 = vsel %vm31, %v27, 0.0
    %33 = vadd.xlane.f32.xlu0 %v32
    %v34 = vpop.xlane.xlu0 %33
    %v35 = vsel %vm31, %v28, 0.0
    %36 = vadd.xlane.f32.xlu0 %v35
    %v37 = vpop.xlane.xlu0 %36
    %v38 = vsel %vm31, %v29, 0.0
    %39 = vadd.xlane.f32.xlu0 %v38
    %v40 = vpop.xlane.xlu0 %39
    %v41 = vsel %vm31, %v30, 0.0
    %42 = vadd.xlane.f32.xlu0 %v41
    %v43 = vpop.xlane.xlu0 %42
    %v44 = vrsqrt.pop %v34
    %v45 = vmul.f32 %v34, %v44
    %vm46 = vcmp.eq.f32.partialorder %v34, inf
    %v47 = vsel %vm46, %v34, %v45
    %vm48 = vcmp.eq.f32.partialorder %v34, 0.0
    %v49 = vand.u32 %v34, 2147483648
    %v50 = vsel %vm48, %v49, %v47
    %v51 = vrsqrt.pop %v37
    %v52 = vmul.f32 %v37, %v51
    %vm53 = vcmp.eq.f32.partialorder %v37, inf
    %v54 = vsel %vm53, %v37, %v52
    %vm55 = vcmp.eq.f32.partialorder %v37, 0.0
    %v56 = vand.u32 %v37, 2147483648
    %v57 = vsel %vm55, %v56, %v54
    %v58 = vrsqrt.pop %v40
    %v59 = vmul.f32 %v40, %v58
    %vm60 = vcmp.eq.f32.partialorder %v40, inf
    %v61 = vsel %vm60, %v40, %v59
    %vm62 = vcmp.eq.f32.partialorder %v40, 0.0
    %v63 = vand.u32 %v40, 2147483648
    %v64 = vsel %vm62, %v63, %v61
    %v65 = vrsqrt.pop %v43
    %v66 = vmul.f32 %v43, %v65
    %vm67 = vcmp.eq.f32.partialorder %v43, inf
    %v68 = vsel %vm67, %v43, %v66
    %vm69 = vcmp.eq.f32.partialorder %v43, 0.0
    %v70 = vand.u32 %v43, 2147483648
    %v71 = vsel %vm69, %v70, %v68
    %v72 = vadd.f32 %v50, 1e-20
    %v73 = vadd.f32 %v57, 1e-20
    %v74 = vadd.f32 %v64, 1e-20
    %v75 = vadd.f32 %v71, 1e-20
    %v76 = vrcp.pop %v72
    %v77 = vrcp.pop %v73
    %v78 = vrcp.pop %v74
    %v79 = vrcp.pop %v75
    %v80 = vsub.f32 0.0, %v50
    %v81 = vsub.f32 0.0, %v57
    %v82 = vsub.f32 0.0, %v64
    %v83 = vsub.f32 0.0, %v71
    %v84 = vmul.f32 %v80, 1.442695
    %v85 = vpow.pop %v84
    %v86 = vmul.f32 %v81, 1.442695
    %v87 = vpow.pop %v86
    %v88 = vmul.f32 %v82, 1.442695
    %v89 = vpow.pop %v88
    %v90 = vmul.f32 %v83, 1.442695
    %v91 = vpow.pop %v90
    %v92 = vsub.f32 1.0, %v85
    %v93 = vsub.f32 1.0, %v87
    %v94 = vsub.f32 1.0, %v89
    %v95 = vsub.f32 1.0, %v91
    %v96 = vmul.f32 %v92, %v76
    %v97 = vmul.f32 %v93, %v77
    %v98 = vmul.f32 %v94, %v78
    %v99 = vmul.f32 %v95, %v79
    %v100 = vmul.f32 %v23, %v96
    %v101 = vmul.f32 %v24, %v97
    %v102 = vmul.f32 %v25, %v98
    %v103 = vmul.f32 %v26, %v99
    %104 = vst.msk [vmem:[#allocation5] sm:$0xff] %vm31, %v100
    %105 = vst.msk [vmem:[#allocation5 + $0x8] sm:$0xff] %vm31, %v101
    %106 = vst.msk [vmem:[#allocation5 + $0x10] sm:$0xff] %vm31, %v102
    %107 = vst.msk [vmem:[#allocation5 + $0x18] sm:$0xff] %vm31, %v103
    // Predicated region
    $region10: #{tpu_custom_call.1} parent=1 // pred_check
      _
    $region11: #{tpu_custom_call.1} parent=1 // pred_check_branch
      %109 = sbr.rel (0) target = $region13
    $region12: #{tpu_custom_call.1} parent=1 // pred_region
      %s111 = ssub.s32 512, 512
      %112 = vsyncadd [#allocation4], %s111
      %s113 = sshll.u32 [#allocation5], 4
      %s114 = int_to_ptr.vmem [resolvable:$true] %s113
      %119 = dma.vmem_to_hbm [thread:$0]  %s114, 512, %s1, [#allocation4], 128, 128, 8
    $region13: #{tpu_custom_call.1} parent=1 // pred_fallthru
      _
    // Predicated region
    $region14: #{tpu_custom_call.1} parent=1 // pred_check
      _
    $region15: #{tpu_custom_call.1} parent=1 // pred_check_branch
      %121 = sbr.rel (0) target = $region17
    $region16: #{tpu_custom_call.1} parent=1 // pred_region
      %122 = dma.done [#allocation4], 512
    $region17: #{tpu_custom_call.1} parent=1 // pred_fallthru
      _
    %123 = vsyncpa [#allocation3], 1
    %124 = vsyncpa [#allocation4], 1

</llo_original>
